<compile_context>
chip_gen: v5e
topology: v5e:2x2
jax: 0.10.0
libtpu: 0.0.40
codegen_flags: <defaults>
</compile_context>

<pallas_src>
import functools

import jax
import jax.numpy as jnp
from jax.experimental import pallas as pl
from jax.experimental.pallas import tpu as pltpu


# --------------------------------------------------------------------------
# Tiling helpers
# --------------------------------------------------------------------------
def _round_up(a, m):
    return -(-a // m) * m


def _spatial_tiling(hw, c, itemsize, target_bytes=2 << 20, max_lanes=8192):
    """Pick a lane-dense spatial tile (multiple of 128) of ~target_bytes per (C, hw_blk)."""
    cap = max(128, min(max_lanes, (target_bytes // max(1, c * itemsize)) // 128 * 128))
    n_tiles = max(1, -(-hw // cap))
    hw_blk = _round_up(-(-hw // n_tiles), 128)
    hw_pad = n_tiles * hw_blk
    return hw_blk, hw_pad


# --------------------------------------------------------------------------
# Phase 1: pooled sum over spatial tiles + excite (FC -> ReLU -> FC -> sigmoid)
# --------------------------------------------------------------------------
def _pool_excite_kernel(x_ref, w1_ref, b1_ref, w2_ref, b2_ref, y_ref, acc_ref,
                        *, inv_hw):
    # x_ref: (1, C, HW_blk)   w1: (Cr, C)  b1: (Cr, 1)  w2: (C, Cr)  b2: (C, 1)
    # y_ref: (1, C, 1)        acc_ref: (C, 1) f32 scratch (persists over HW axis)
    hw = pl.program_id(1)

    @pl.when(hw == 0)
    def _():
        acc_ref[...] = jnp.zeros_like(acc_ref)

    # Partial spatial sum for this tile, accumulated in f32 (XLU lane reduction).
    acc_ref[...] += jnp.sum(x_ref[0].astype(jnp.float32), axis=-1, keepdims=True)

    @pl.when(hw == pl.num_programs(1) - 1)
    def _():
        pooled = acc_ref[...] * inv_hw                                   # (C, 1)
        h = jnp.dot(w1_ref[...], pooled,
                    preferred_element_type=jnp.float32) + b1_ref[...]    # (Cr, 1)
        h = jnp.maximum(h, 0.0)
        gate = jax.nn.sigmoid(
            jnp.dot(w2_ref[...], h,
                    preferred_element_type=jnp.float32) + b2_ref[...])   # (C, 1)
        y_ref[...] = gate[None].astype(y_ref.dtype)                      # (1, C, 1)


# --------------------------------------------------------------------------
# Phase 2: stream x once more and scale by the precomputed gate
# --------------------------------------------------------------------------
def _scale_kernel(x_ref, y_ref, o_ref):
    # x_ref/o_ref: (1, C, HW_blk) in x's dtype; y_ref: (1, C, 1) already in x's dtype,
    # so the multiply stays in the input dtype (no full-tile f32 upcast).
    o_ref[...] = (x_ref[...] * y_ref[...]).astype(o_ref.dtype)


# --------------------------------------------------------------------------
# Wrapper
# --------------------------------------------------------------------------
def se_layer(x, w1, b1, w2, b2):
    """SE forward pass.

    x  : (B, C, H, W)          activation (NCHW, any float dtype)
    w1 : (C//r, C), b1: (C//r,)   -- torch nn.Linear(C, C//r) native layout
    w2 : (C, C//r), b2: (C,)      -- torch nn.Linear(C//r, C) native layout
    Returns (B, C, H, W) in x.dtype.
    """
    B, C, H, W = x.shape
    Cr = w1.shape[0]
    hw = H * W
    itemsize = jnp.dtype(x.dtype).itemsize

    hw_blk, hw_pad = _spatial_tiling(hw, C, itemsize)
    n_hw = hw_pad // hw_blk

    x_flat = x.reshape(B, C, hw)
    if hw_pad != hw:
        # Zero padding: does not perturb the pooled sum; padded outputs are sliced off.
        x_flat = jnp.pad(x_flat, ((0, 0), (0, 0), (0, hw_pad - hw)))

    w1f = w1.astype(jnp.float32)
    w2f = w2.astype(jnp.float32)
    b1c = b1.reshape(Cr, 1).astype(jnp.float32)
    b2c = b2.reshape(C, 1).astype(jnp.float32)

    x_bytes = B * C * hw_pad * itemsize

    # ---- Phase 1: pooled mean + excite -> gate (B, C, 1) in x.dtype --------
    gate = pl.pallas_call(
        functools.partial(_pool_excite_kernel, inv_hw=1.0 / float(hw)),
        out_shape=jax.ShapeDtypeStruct((B, C, 1), x.dtype),
        grid_spec=pltpu.PrefetchScalarGridSpec(
            num_scalar_prefetch=0,
            grid=(B, n_hw),
            in_specs=[
                pl.BlockSpec((1, C, hw_blk), lambda b, h: (b, 0, h)),
                pl.BlockSpec((Cr, C), lambda b, h: (0, 0)),
                pl.BlockSpec((Cr, 1), lambda b, h: (0, 0)),
                pl.BlockSpec((C, Cr), lambda b, h: (0, 0)),
                pl.BlockSpec((C, 1), lambda b, h: (0, 0)),
            ],
            out_specs=pl.BlockSpec((1, C, 1), lambda b, h: (b, 0, 0)),
            scratch_shapes=[pltpu.VMEM((C, 1), jnp.float32)],
        ),
        compiler_params=pltpu.CompilerParams(
            dimension_semantics=("parallel", "arbitrary")),
        cost_estimate=pl.CostEstimate(
            flops=2 * B * C * hw_pad + 4 * B * C * Cr,
            transcendentals=B * C,
            bytes_accessed=x_bytes + 4 * (2 * C * Cr + C + Cr) + B * C * itemsize),
    )(x_flat, w1f, b1c, w2f, b2c)

    # ---- Phase 2: stream x again and apply the gate -------------------------
    out = pl.pallas_call(
        _scale_kernel,
        out_shape=jax.ShapeDtypeStruct((B, C, hw_pad), x.dtype),
        grid_spec=pltpu.PrefetchScalarGridSpec(
            num_scalar_prefetch=0,
            grid=(B, n_hw),
            in_specs=[
                pl.BlockSpec((1, C, hw_blk), lambda b, h: (b, 0, h)),
                pl.BlockSpec((1, C, 1), lambda b, h: (b, 0, 0)),
            ],
            out_specs=pl.BlockSpec((1, C, hw_blk), lambda b, h: (b, 0, h)),
        ),
        compiler_params=pltpu.CompilerParams(
            dimension_semantics=("parallel", "parallel")),
        cost_estimate=pl.CostEstimate(
            flops=B * C * hw_pad,
            transcendentals=0,
            bytes_accessed=2 * x_bytes + B * C * itemsize),
    )(x_flat, gate)

    if hw_pad != hw:
        out = out[:, :, :hw]
    return out.reshape(B, C, H, W)


def se_layer_ref(x, w1, b1, w2, b2):
    """Pure-JAX reference mirroring the PyTorch module (torch-native weight layout)."""
    pooled = jnp.mean(x.astype(jnp.float32), axis=(2, 3))               # (B, C)
    h = jnp.maximum(pooled @ w1.T + b1, 0.0)                            # (B, Cr)
    y = jax.nn.sigmoid(h @ w2.T + b2)                                   # (B, C)
    return (x.astype(jnp.float32) * y[:, :, None, None]).astype(x.dtype)


if __name__ == "__main__":
    B, C, H, W = 2, 4, 16, 16
    reduction = 2
    Cr = C // reduction

    key = jax.random.PRNGKey(0)
    kx, k1, k2, k3, k4 = jax.random.split(key, 5)

    x = jax.random.normal(kx, (B, C, H, W), dtype=jnp.float32)

    # nn.Linear(C, Cr) and nn.Linear(Cr, C) in native torch layout (out, in).
    w1 = jax.random.normal(k1, (Cr, C), dtype=jnp.float32) * 0.5
    b1 = jax.random.normal(k2, (Cr,), dtype=jnp.float32) * 0.1
    w2 = jax.random.normal(k3, (C, Cr), dtype=jnp.float32) * 0.5
    b2 = jax.random.normal(k4, (C,), dtype=jnp.float32) * 0.1

    out = se_layer(x, w1, b1, w2, b2)
    out = jax.block_until_ready(out)

    ref = se_layer_ref(x, w1, b1, w2, b2)
    assert out.shape == (B, C, H, W)
    assert jnp.allclose(out, ref, atol=1e-5, rtol=1e-5), "mismatch vs reference"

    print("KERNEL_OK")
</pallas_src>

<mosaic_0001>
module attributes {stable_mosaic.version = 11 : i64} {
  func.func @_pool_excite_kernel(%arg0: i32, %arg1: i32, %arg2: memref<1x4x256xf32, #tpu.memory_space<vmem>>, %arg3: memref<2x4xf32, #tpu.memory_space<vmem>>, %arg4: memref<2x1xf32, #tpu.memory_space<vmem>>, %arg5: memref<4x2xf32, #tpu.memory_space<vmem>>, %arg6: memref<4x1xf32, #tpu.memory_space<vmem>>, %arg7: memref<1x4x1xf32, #tpu.memory_space<vmem>>, %arg8: memref<4x1xf32, #tpu.memory_space<vmem>>) attributes {dimension_semantics = [#tpu.dimension_semantics<parallel>, #tpu.dimension_semantics<arbitrary>], iteration_bounds = array<i64: 2, 1>, scalar_prefetch = 0 : i64, scratch_operands = 1 : i64, tpu.core_type = #tpu.core_type<tc>, window_params = [{transform_indices = @transform_0, window_bounds = array<i64: 1, 4, 256>}, {pipeline_mode = #tpu.pipeline_mode<synchronous>, transform_indices = @transform_1, window_bounds = array<i64: 2, 4>}, {pipeline_mode = #tpu.pipeline_mode<synchronous>, transform_indices = @transform_2, window_bounds = array<i64: 2, 1>}, {pipeline_mode = #tpu.pipeline_mode<synchronous>, transform_indices = @transform_3, window_bounds = array<i64: 4, 2>}, {pipeline_mode = #tpu.pipeline_mode<synchronous>, transform_indices = @transform_4, window_bounds = array<i64: 4, 1>}, {transform_indices = @transform_5, window_bounds = array<i64: 1, 4, 1>}]} {
    %c0_i32 = arith.constant 0 : i32
    %0 = arith.cmpi eq, %arg1, %c0_i32 : i32
    %1 = arith.extui %0 : i1 to i32
    %c0_i32_0 = arith.constant 0 : i32
    %2 = arith.cmpi ne, %1, %c0_i32_0 : i32
    scf.if %2 {
      %cst_9 = arith.constant 0.000000e+00 : f32
      %13 = vector.broadcast %cst_9 : f32 to vector<4x1xf32>
      %c0_10 = arith.constant 0 : index
      %c0_11 = arith.constant 0 : index
      %14 = vector.load %arg8[%c0_10, %c0_11] : memref<4x1xf32, #tpu.memory_space<vmem>>, vector<4x1xf32>
      tpu.vector_store %arg8[%c0_10, %c0_11], %13 {strides = array<i32>} : memref<4x1xf32, #tpu.memory_space<vmem>>, vector<4x1xf32>,
    } else {
    }
    %c0 = arith.constant 0 : index
    %c0_1 = arith.constant 0 : index
    %3 = vector.load %arg8[%c0, %c0_1] : memref<4x1xf32, #tpu.memory_space<vmem>>, vector<4x1xf32>
    %c0_2 = arith.constant 0 : index
    %c0_3 = arith.constant 0 : index
    %c0_4 = arith.constant 0 : index
    %4 = vector.load %arg2[%c0_2, %c0_3, %c0_4] : memref<1x4x256xf32, #tpu.memory_space<vmem>>, vector<1x4x256xf32>
    %5 = vector.shape_cast %4 : vector<1x4x256xf32> to vector<4x256xf32>
    %cst = arith.constant dense<0.000000e+00> : vector<4xf32>
    %6 = vector.multi_reduction <add>, %5, %cst [1] : vector<4x256xf32> to vector<4xf32>
    %7 = vector.shape_cast %6 : vector<4xf32> to vector<4x1xf32>
    %8 = arith.addf %3, %7 : vector<4x1xf32>
    %c0_5 = arith.constant 0 : index
    %c0_6 = arith.constant 0 : index
    %9 = vector.load %arg8[%c0_5, %c0_6] : memref<4x1xf32, #tpu.memory_space<vmem>>, vector<4x1xf32>
    tpu.vector_store %arg8[%c0_5, %c0_6], %8 {strides = array<i32>} : memref<4x1xf32, #tpu.memory_space<vmem>>, vector<4x1xf32>,
    %c0_i32_7 = arith.constant 0 : i32
    %10 = arith.cmpi eq, %arg1, %c0_i32_7 : i32
    %11 = arith.extui %10 : i1 to i32
    %c0_i32_8 = arith.constant 0 : i32
    %12 = arith.cmpi ne, %11, %c0_i32_8 : i32
    scf.if %12 {
      %c0_9 = arith.constant 0 : index
      %c0_10 = arith.constant 0 : index
      %13 = vector.load %arg8[%c0_9, %c0_10] : memref<4x1xf32, #tpu.memory_space<vmem>>, vector<4x1xf32>
      %cst_11 = arith.constant 3.906250e-03 : f32
      %14 = vector.broadcast %cst_11 : f32 to vector<4x1xf32>
      %15 = arith.mulf %13, %14 : vector<4x1xf32>
      %c0_12 = arith.constant 0 : index
      %c0_13 = arith.constant 0 : index
      %16 = vector.load %arg3[%c0_12, %c0_13] : memref<2x4xf32, #tpu.memory_space<vmem>>, vector<2x4xf32>
      %cst_14 = arith.constant dense<0.000000e+00> : vector<2x1xf32>
      %17 = tpu.matmul %16, %15, %cst_14 {dimension_numbers = #tpu.dot_dimension_numbers<[1], [0], [0], [1], [0, 0, 1, 1], [], []>} : vector<2x4xf32>, vector<4x1xf32>, vector<2x1xf32> -> vector<2x1xf32>
      %c0_15 = arith.constant 0 : index
      %c0_16 = arith.constant 0 : index
      %18 = vector.load %arg4[%c0_15, %c0_16] : memref<2x1xf32, #tpu.memory_space<vmem>>, vector<2x1xf32>
      %19 = arith.addf %17, %18 : vector<2x1xf32>
      %cst_17 = arith.constant 0.000000e+00 : f32
      %20 = vector.broadcast %cst_17 : f32 to vector<2x1xf32>
      %21 = arith.maximumf %19, %20 : vector<2x1xf32>
      %c0_18 = arith.constant 0 : index
      %c0_19 = arith.constant 0 : index
      %22 = vector.load %arg5[%c0_18, %c0_19] : memref<4x2xf32, #tpu.memory_space<vmem>>, vector<4x2xf32>
      %cst_20 = arith.constant dense<0.000000e+00> : vector<4x1xf32>
      %23 = tpu.matmul %22, %21, %cst_20 {dimension_numbers = #tpu.dot_dimension_numbers<[1], [0], [0], [1], [0, 0, 1, 1], [], []>} : vector<4x2xf32>, vector<2x1xf32>, vector<4x1xf32> -> vector<4x1xf32>
      %c0_21 = arith.constant 0 : index
      %c0_22 = arith.constant 0 : index
      %24 = vector.load %arg6[%c0_21, %c0_22] : memref<4x1xf32, #tpu.memory_space<vmem>>, vector<4x1xf32>
      %25 = arith.addf %23, %24 : vector<4x1xf32>
      %26 = arith.negf %25 : vector<4x1xf32>
      %27 = math.exp %26 : vector<4x1xf32>
      %cst_23 = arith.constant 1.000000e+00 : f32
      %28 = vector.broadcast %cst_23 : f32 to vector<4x1xf32>
      %29 = arith.addf %28, %27 : vector<4x1xf32>
      %30 = arith.divf %28, %29 : vector<4x1xf32>
      %31 = vector.shape_cast %30 : vector<4x1xf32> to vector<1x4x1xf32>
      %c0_24 = arith.constant 0 : index
      %c0_25 = arith.constant 0 : index
      %c0_26 = arith.constant 0 : index
      %32 = vector.load %arg7[%c0_24, %c0_25, %c0_26] : memref<1x4x1xf32, #tpu.memory_space<vmem>>, vector<1x4x1xf32>
      tpu.vector_store %arg7[%c0_24, %c0_25, %c0_26], %31 {strides = array<i32>} : memref<1x4x1xf32, #tpu.memory_space<vmem>>, vector<1x4x1xf32>,
    } else {
    }
    return
  }
  func.func @transform_0(%arg0: i32, %arg1: i32) -> (i32, i32, i32) {
    %c0_i32 = arith.constant 0 : i32
    %c0_i32_0 = arith.constant 0 : i32
    return %arg0, %c0_i32, %arg1 : i32, i32, i32
  }
  func.func @transform_1(%arg0: i32, %arg1: i32) -> (i32, i32) {
    %c0_i32 = arith.constant 0 : i32
    %c0_i32_0 = arith.constant 0 : i32
    %c0_i32_1 = arith.constant 0 : i32
    return %c0_i32, %c0_i32_0 : i32, i32
  }
  func.func @transform_2(%arg0: i32, %arg1: i32) -> (i32, i32) {
    %c0_i32 = arith.constant 0 : i32
    %c0_i32_0 = arith.constant 0 : i32
    %c0_i32_1 = arith.constant 0 : i32
    return %c0_i32, %c0_i32_0 : i32, i32
  }
  func.func @transform_3(%arg0: i32, %arg1: i32) -> (i32, i32) {
    %c0_i32 = arith.constant 0 : i32
    %c0_i32_0 = arith.constant 0 : i32
    %c0_i32_1 = arith.constant 0 : i32
    return %c0_i32, %c0_i32_0 : i32, i32
  }
  func.func @transform_4(%arg0: i32, %arg1: i32) -> (i32, i32) {
    %c0_i32 = arith.constant 0 : i32
    %c0_i32_0 = arith.constant 0 : i32
    %c0_i32_1 = arith.constant 0 : i32
    return %c0_i32, %c0_i32_0 : i32, i32
  }
  func.func @transform_5(%arg0: i32, %arg1: i32) -> (i32, i32, i32) {
    %c0_i32 = arith.constant 0 : i32
    %c0_i32_0 = arith.constant 0 : i32
    %c0_i32_1 = arith.constant 0 : i32
    return %arg0, %c0_i32, %c0_i32_0 : i32, i32, i32
  }
}

</mosaic_0001>

<llo_original>
// kernel: tpu_custom_call.1
$region0: #{tpu_custom_call.1}
  #allocation0 [shape = 'u32[]', space=smem, size = 0x4, offset = 0x4, fixed_abs, tag = 'smem constant byte address 0x4 - core index']
  #allocation1 [shape = 'u32[72,128]{1,0:T(1,128)}', space=vmem, size = 0x9000, scoped, tag = 'internal scratch']
  #allocation2 [shape = 'f32[4,1]{1,0:T(4,128)}', space=vmem, size = 0x800, scoped, tag = 'scratch operand']
  %s0 = inlined_call_operand.hbm [shape: f32[2,4,256], index: 0, kind: input, shape index: {}]
  %s1 = inlined_call_operand.vmem [shape: f32[2,4], index: 1, kind: input, shape index: {}]
  %s2 = inlined_call_operand.vmem [shape: f32[2,1], index: 2, kind: input, shape index: {}]
  %s3 = inlined_call_operand.vmem [shape: f32[4,2], index: 3, kind: input, shape index: {}]
  %s4 = inlined_call_operand.vmem [shape: f32[4,1], index: 4, kind: input, shape index: {}]
  %s5 = inlined_call_operand.vmem [shape: f32[2,4,1], index: 5, kind: output, shape index: {}]
  %s6 = sld [smem:[#allocation0]]
  $region65: #{tpu_custom_call.1} parent=0
    _
  %s8 = ssub.s32 1, %s6
  %s9 = scalar_select 0, %s8, %s6
  $region1: #{tpu_custom_call.1} parent=0
    #allocation3 [shape = 'u8[8192]{0}', space=vmem, size = 0x2000, scoped, tag = 'input window, operand 0']
    #allocation4 [shape = 's32[2]{0}', space=sflag, size = 0x8, scoped, tag = 'scoped memory for tpu_custom_call.1']
    %10 = vsyncpa [#allocation4], 0
    %s11 = scalar_lea.sflag [#allocation4], 1
    %12 = vsyncpa %s11, 0
    loop: start=0, step=1, limit=4
    $region2: #{tpu_custom_call.1} parent=1 // loop_pre_header
      _
    $region3: #{tpu_custom_call.1} parent=1 // loop_header
      %s14 = sphi 0, %s18
      %p15 = scmp.ge.s32.totalorder %s14, 4
      %s21 = sphi 0, %s33
      %s22 = sphi 0, %s29
      %s23 = sphi 0, %s21
      %s24 = sphi 0, %s22
      %s25 = sphi 0, %s23
      %s26 = sphi 0, %s24
      %s38 = sphi 0, %s40
      %s41 = sphi 0, %s38
      %s42 = sphi 0, %s41
      %s58 = sphi 0, %s42
      %s62 = sphi 0, %s62
      %s64 = sphi 0, %s62
      %s65 = sphi 0, %s64
      %s79 = sphi 0, %s65
      %s83 = sphi 0, %s83
      %s85 = sphi 0, %s83
      %s86 = sphi 0, %s85
      %s100 = sphi 0, %s86
      %s104 = sphi 0, %s104
      %s106 = sphi 0, %s104
      %s107 = sphi 0, %s106
      %s121 = sphi 0, %s107
      %s125 = sphi 0, %s125
      %s127 = sphi 0, %s125
      %s128 = sphi 0, %s127
      %s142 = sphi 0, %s128
      %s148 = sphi 0, %s150
      %s151 = sphi 0, %s148
      %s152 = sphi 0, %s151
      %s168 = sphi 0, %s152
    $region4: #{tpu_custom_call.1} parent=1 // loop_header_branch
      %17 = sbr.rel (%p15) target = $region8
    $region5: #{tpu_custom_call.1} parent=1 // loop_body
      %s19 = ssub.s32 %s14, 1
      %s20 = ssub.s32 %s14, 2
      %s27 = sadd.s32 1, %s22
      %p28 = scmp.ge.s32.totalorder %s27, 1
      %s29 = scalar_select %p28, 0, %s27
      %s30 = sadd.s32 1, %s21
      %s31 = scalar_select %p28, %s30, %s21
      %p32 = scmp.ge.s32.totalorder %s31, 2
      %s33 = scalar_select %p32, 0, %s31
      %s34 = ssub.s32 %s21, %s33
      %s35 = ssub.s32 %s22, %s29
      %s36 = sor.u32 %s34, %s35
      %p37 = scmp.eq.s32.totalorder %s36, 0
      %s39 = sadd.s32 %s38, 1
      %s40 = scalar_select %p37, %s38, %s39
      %p43 = pneg %p37
      %p44 = scmp.eq.s32.totalorder %s14, 1
      %p45 = por %p43, %p44
      %p46 = scmp.ne.s32.totalorder %s38, %s41
      %p47 = scmp.eq.s32.totalorder %s14, 0
      %p48 = por %p46, %p47
      %p49 = scmp.ne.s32.totalorder %s38, %s41
      %p50 = scmp.eq.s32.totalorder %s19, 1
      %p51 = por %p49, %p50
      %p52 = scmp.ne.s32.totalorder %s41, %s42
      %p53 = scmp.eq.s32.totalorder %s19, 0
      %p54 = por %p52, %p53
      %p55 = scmp.ne.s32.totalorder %s41, %s42
      %p56 = scmp.eq.s32.totalorder %s20, 1
      %p57 = por %p55, %p56
      %p59 = scmp.ne.s32.totalorder %s42, %s58
      %p60 = scmp.eq.s32.totalorder %s20, 0
      %p61 = por %p59, %p60
      %s63 = sadd.s32 %s62, 1
      %p66 = scmp.eq.s32.totalorder %s14, 1
      %p67 = scmp.ne.s32.totalorder %s62, %s64
      %p68 = scmp.eq.s32.totalorder %s14, 0
      %p69 = por %p67, %p68
      %p70 = scmp.ne.s32.totalorder %s62, %s64
      %p71 = scmp.eq.s32.totalorder %s19, 1
      %p72 = por %p70, %p71
      %p73 = scmp.ne.s32.totalorder %s64, %s65
      %p74 = scmp.eq.s32.totalorder %s19, 0
      %p75 = por %p73, %p74
      %p76 = scmp.ne.s32.totalorder %s64, %s65
      %p77 = scmp.eq.s32.totalorder %s20, 1
      %p78 = por %p76, %p77
      %p80 = scmp.ne.s32.totalorder %s65, %s79
      %p81 = scmp.eq.s32.totalorder %s20, 0
      %p82 = por %p80, %p81
      %s84 = sadd.s32 %s83, 1
      %p87 = scmp.eq.s32.totalorder %s14, 1
      %p88 = scmp.ne.s32.totalorder %s83, %s85
      %p89 = scmp.eq.s32.totalorder %s14, 0
      %p90 = por %p88, %p89
      %p91 = scmp.ne.s32.totalorder %s83, %s85
      %p92 = scmp.eq.s32.totalorder %s19, 1
      %p93 = por %p91, %p92
      %p94 = scmp.ne.s32.totalorder %s85, %s86
      %p95 = scmp.eq.s32.totalorder %s19, 0
      %p96 = por %p94, %p95
      %p97 = scmp.ne.s32.totalorder %s85, %s86
      %p98 = scmp.eq.s32.totalorder %s20, 1
      %p99 = por %p97, %p98
      %p101 = scmp.ne.s32.totalorder %s86, %s100
      %p102 = scmp.eq.s32.totalorder %s20, 0
      %p103 = por %p101, %p102
      %s105 = sadd.s32 %s104, 1
      %p108 = scmp.eq.s32.totalorder %s14, 1
      %p109 = scmp.ne.s32.totalorder %s104, %s106
      %p110 = scmp.eq.s32.totalorder %s14, 0
      %p111 = por %p109, %p110
      %p112 = scmp.ne.s32.totalorder %s104, %s106
      %p113 = scmp.eq.s32.totalorder %s19, 1
      %p114 = por %p112, %p113
      %p115 = scmp.ne.s32.totalorder %s106, %s107
      %p116 = scmp.eq.s32.totalorder %s19, 0
      %p117 = por %p115, %p116
      %p118 = scmp.ne.s32.totalorder %s106, %s107
      %p119 = scmp.eq.s32.totalorder %s20, 1
      %p120 = por %p118, %p119
      %p122 = scmp.ne.s32.totalorder %s107, %s121
      %p123 = scmp.eq.s32.totalorder %s20, 0
      %p124 = por %p122, %p123
      %s126 = sadd.s32 %s125, 1
      %p129 = scmp.eq.s32.totalorder %s14, 1
      %p130 = scmp.ne.s32.totalorder %s125, %s127
      %p131 = scmp.eq.s32.totalorder %s14, 0
      %p132 = por %p130, %p131
      %p133 = scmp.ne.s32.totalorder %s125, %s127
      %p134 = scmp.eq.s32.totalorder %s19, 1
      %p135 = por %p133, %p134
      %p136 = scmp.ne.s32.totalorder %s127, %s128
      %p137 = scmp.eq.s32.totalorder %s19, 0
      %p138 = por %p136, %p137
      %p139 = scmp.ne.s32.totalorder %s127, %s128
      %p140 = scmp.eq.s32.totalorder %s20, 1
      %p141 = por %p139, %p140
      %p143 = scmp.ne.s32.totalorder %s128, %s142
      %p144 = scmp.eq.s32.totalorder %s20, 0
      %p145 = por %p143, %p144
      %s146 = ssub.s32 %s21, %s33
      %p147 = scmp.eq.s32.totalorder %s146, 0
      %s149 = sadd.s32 %s148, 1
      %s150 = scalar_select %p147, %s148, %s149
      %p153 = pneg %p147
      %p154 = scmp.eq.s32.totalorder %s14, 1
      %p155 = por %p153, %p154
      %p156 = scmp.ne.s32.totalorder %s148, %s151
      %p157 = scmp.eq.s32.totalorder %s14, 0
      %p158 = por %p156, %p157
      %p159 = scmp.ne.s32.totalorder %s148, %s151
      %p160 = scmp.eq.s32.totalorder %s19, 1
      %p161 = por %p159, %p160
      %p162 = scmp.ne.s32.totalorder %s151, %s152
      %p163 = scmp.eq.s32.totalorder %s19, 0
      %p164 = por %p162, %p163
      %p165 = scmp.ne.s32.totalorder %s151, %s152
      %p166 = scmp.eq.s32.totalorder %s20, 1
      %p167 = por %p165, %p166
      %p169 = scmp.ne.s32.totalorder %s152, %s168
      %p170 = scmp.eq.s32.totalorder %s20, 0
      %p171 = por %p169, %p170
      %p172 = scmp.le.s32.totalorder 1, %s14
      %p173 = scmp.lt.s32.totalorder %s14, 3
      %p174 = pnand %p172, %p173
      %p175 = pneg %p174
      // Predicated region
      $region9: #{tpu_custom_call.1} parent=5 // pred_check
        _
      $region10: #{tpu_custom_call.1} parent=5 // pred_check_branch
        %177 = sbr.rel (%p174) target = $region12
      $region11: #{tpu_custom_call.1} parent=5 // pred_region
        %s178 = ssub.s32 %s14, 1
        // Predicated region
        $region13: #{tpu_custom_call.1} parent=11 // pred_check
          %p179 = pneg %p75
        $region14: #{tpu_custom_call.1} parent=11 // pred_check_branch
          %181 = sbr.rel (%p179) target = $region16
        $region15: #{tpu_custom_call.1} parent=11 // pred_region
          _
        $region16: #{tpu_custom_call.1} parent=11 // pred_fallthru
          _
        // Predicated region
        $region17: #{tpu_custom_call.1} parent=11 // pred_check
          %p182 = pneg %p96
        $region18: #{tpu_custom_call.1} parent=11 // pred_check_branch
          %184 = sbr.rel (%p182) target = $region20
        $region19: #{tpu_custom_call.1} parent=11 // pred_region
          _
        $region20: #{tpu_custom_call.1} parent=11 // pred_fallthru
          _
        // Predicated region
        $region21: #{tpu_custom_call.1} parent=11 // pred_check
          %p185 = pneg %p117
        $region22: #{tpu_custom_call.1} parent=11 // pred_check_branch
          %187 = sbr.rel (%p185) target = $region24
        $region23: #{tpu_custom_call.1} parent=11 // pred_region
          _
        $region24: #{tpu_custom_call.1} parent=11 // pred_fallthru
          _
        // Predicated region
        $region25: #{tpu_custom_call.1} parent=11 // pred_check
          %p188 = pneg %p138
        $region26: #{tpu_custom_call.1} parent=11 // pred_check_branch
          %190 = sbr.rel (%p188) target = $region28
        $region27: #{tpu_custom_call.1} parent=11 // pred_region
          _
        $region28: #{tpu_custom_call.1} parent=11 // pred_fallthru
          _
      $region12: #{tpu_custom_call.1} parent=5 // pred_fallthru
        _
      %p191 = scmp.lt.s32.totalorder %s14, 2
      // Predicated region
      $region29: #{tpu_custom_call.1} parent=5 // pred_check
        %p192 = pneg %p191
      $region30: #{tpu_custom_call.1} parent=5 // pred_check_branch
        %194 = sbr.rel (%p192) target = $region32
      $region31: #{tpu_custom_call.1} parent=5 // pred_region
        // Predicated region
        $region33: #{tpu_custom_call.1} parent=31 // pred_check
          %p195 = pneg %p48
        $region34: #{tpu_custom_call.1} parent=31 // pred_check_branch
          %197 = sbr.rel (%p195) target = $region36
        $region35: #{tpu_custom_call.1} parent=31 // pred_region
          %s198 = sand.u32 %s38, 1
          %s199 = scalar_lea.sflag [#allocation4], %s198
          %s200 = sand.u32 %s38, 1
          %s201 = smul.addr %s200, 8
          %s202 = scalar_lea.vmem [#allocation3], %s201
          %s203 = smul.u32 2, %s22
          %205 = vsyncadd %s199, 0
          %s206 = smul.addr %s21, 2
          %s207 = sadd.s32 %s203, %s206
          %s208 = smul.addr %s207, 4
          %s209 = scalar_lea.hbm %s0, %s208
          %s211 = sshll.u32 %s209, 4
          %s212 = int_to_ptr.hbm [resolvable:$true] %s211
          %s213 = sshll.u32 %s202, 4
          %s214 = int_to_ptr.vmem [resolvable:$true] %s213
          %216 = dma.hbm_to_vmem [thread:$0]  %s212, 128, %s214, %s199
        $region36: #{tpu_custom_call.1} parent=31 // pred_fallthru
          _
      $region32: #{tpu_custom_call.1} parent=5 // pred_fallthru
        _
      %p217 = scmp.le.s32.totalorder 1, %s14
      %p218 = scmp.lt.s32.totalorder %s14, 3
      %p219 = pnand %p217, %p218
      %p220 = pneg %p219
      // Predicated region
      $region37: #{tpu_custom_call.1} parent=5 // pred_check
        _
      $region38: #{tpu_custom_call.1} parent=5 // pred_check_branch
        %222 = sbr.rel (%p219) target = $region40
      $region39: #{tpu_custom_call.1} parent=5 // pred_region
        %s223 = ssub.s32 %s14, 1
        %s224 = sand.u32 %s41, 1
        %s225 = scalar_lea.sflag [#allocation4], %s224
        %s226 = sand.u32 %s41, 1
        %s227 = smul.addr %s226, 8
        %s228 = scalar_lea.vmem [#allocation3], %s227
        // Predicated region
        $region41: #{tpu_custom_call.1} parent=39 // pred_check
          %p229 = pneg %p54
        $region42: #{tpu_custom_call.1} parent=39 // pred_check_branch
          %231 = sbr.rel (%p229) target = $region44
        $region43: #{tpu_custom_call.1} parent=39 // pred_region
          %233 = dma.done %s225, 128
        $region44: #{tpu_custom_call.1} parent=39 // pred_fallthru
          _
        %s234 = sand.u32 %s41, 1
        %s235 = scalar_lea.sflag [#allocation4], %s234
        %s236 = sand.u32 %s41, 1
        %s237 = smul.addr %s236, 8
        %s238 = scalar_lea.vmem [#allocation3], %s237
        %p239 = pneg %p54
        %p240 = pneg %p51
        %p241 = pneg %p75
        %p242 = pneg %p72
        %p243 = pneg %p96
        %p244 = pneg %p93
        %p245 = pneg %p117
        %p246 = pneg %p114
        %p247 = pneg %p138
        %p248 = pneg %p135
        %p249 = pneg %p164
        %p250 = pneg %p161
        %p251 = scmp.lt.s32.totalorder %s23, 1
        %s252 = scalar_select %p251, %s23, 1
        %s253 = smul.addr %s252, 4
        %s254 = scalar_lea.vmem %s5, %s253
        %s255 = smul.u32 2, %s24
        %p256 = scmp.lt.s32.totalorder %s23, 1
        %s257 = scalar_select %p256, %s23, 1
        %s258 = smul.addr %s257, 4
        %s259 = scalar_lea.vmem %s5, %s258
        %p260 = scmp.eq.s32.totalorder %s24, 0
        // Predicated region
        $region45: #{tpu_custom_call.1} parent=39 // pred_check
          %p261 = pneg %p260
        $region46: #{tpu_custom_call.1} parent=39 // pred_check_branch
          %263 = sbr.rel (%p261) target = $region48
        $region47: #{tpu_custom_call.1} parent=39 // pred_region
          %vm264 = vcmask 3072
          %265 = vst.msk [vmem:[#allocation2] sm:$0xf] %vm264, 0.0
        $region48: #{tpu_custom_call.1} parent=39 // pred_fallthru
          _
        %v266 = vld [vmem:[#allocation2] sm:$0xf]
        %v267 = vld [vmem:[%s228] sm:$0xff]
        %269 = vst [vmem:[#allocation1] ss:$2 sm:$0xff] %v267
        %v270 = vld.sshfl [vmem:[#allocation1] sm:$0xff pattern:$0x75316420]
        %v271 = vld.sshfl [vmem:[#allocation1 + $0x8] sm:$0xff pattern:$0x75316420]
        %vm274 = vcmask 1043456
        %v275 = vsel %vm274, %v270, 0.0
        %v276 = vsel %vm274, %v271, 0.0
        %v277 = vadd.f32 %v275, %v276
        %278 = vadd.xlane.f32.xlu0 %v277
        %v279 = vpop.xlane.xlu0 %278
        %v280 = vadd.f32 %v266, %v279
        %vm281 = vcmask 3072
        %282 = vst.msk [vmem:[#allocation2] sm:$0xf] %vm281, %v280
        // Predicated region
        $region49: #{tpu_custom_call.1} parent=39 // pred_check
          %p283 = pneg %p260
        $region50: #{tpu_custom_call.1} parent=39 // pred_check_branch
          %285 = sbr.rel (%p283) target = $region52
        $region51: #{tpu_custom_call.1} parent=39 // pred_region
          %v286 = vld [vmem:[#allocation2] sm:$0xf]
          %v287 = vmul.f32 %v286, 0.00390625
          %v288 = vld [vmem:[%s1] sm:$0x3]
          %v289 = vld [vmem:[%s2] sm:$0x3]
          %vm290 = vcmask 31744
          %v292 = vsel %vm290, %v288, 0
          %v295 = vsel %vm274, %v287, 0
          %297 = vmatpush.msra.mxu0 0.0
          %298 = vmatpush.msra.mxu0 0.0
          %299 = vmatpush.msra.mxu0 0.0
          %300 = vmatpush.msra.mxu0 0.0
          %301 = vmatpush.msra.mxu0 0.0
          %302 = vmatpush.msra.mxu0 0.0
          %303 = vmatpush.msra.mxu0 0.0
          %304 = vmatpush.msra.mxu0 0.0
          %305 = vmatpush.msra.mxu0 0.0
          %306 = vmatpush.msra.mxu0 0.0
          %307 = vmatpush.msra.mxu0 0.0
          %308 = vmatpush.msra.mxu0 0.0
          %309 = vmatpush.msra.mxu0 0.0
          %310 = vmatpush.msra.mxu0 0.0
          %311 = vmatpush.msra.mxu0 0.0
          %312 = vmatpush.msra.mxu0 %v295
          %313 = vmatmul.f32.gmra.mxu0 %v292
          %v314 = vpop.f32.mrf.mxu0
          %v315 = vadd.f32 %v289, %v314
          %316 = vdwg.mxu0
          %v317 = vmax.f32 %v315, 0.0
          %v318 = vld [vmem:[%s3] sm:$0xf]
          %v319 = vld [vmem:[%s4] sm:$0xf]
          %vm320 = vcmask 15360
          %v322 = vsel %vm320, %v318, 0
          %vm324 = vcmask 1041408
          %v326 = vsel %vm324, %v317, 0
          %328 = vmatpush.msra.mxu0 0.0
          %329 = vmatpush.msra.mxu0 0.0
          %330 = vmatpush.msra.mxu0 0.0
          %331 = vmatpush.msra.mxu0 0.0
          %332 = vmatpush.msra.mxu0 0.0
          %333 = vmatpush.msra.mxu0 0.0
          %334 = vmatpush.msra.mxu0 0.0
          %335 = vmatpush.msra.mxu0 0.0
          %336 = vmatpush.msra.mxu0 0.0
          %337 = vmatpush.msra.mxu0 0.0
          %338 = vmatpush.msra.mxu0 0.0
          %339 = vmatpush.msra.mxu0 0.0
          %340 = vmatpush.msra.mxu0 0.0
          %341 = vmatpush.msra.mxu0 0.0
          %342 = vmatpush.msra.mxu0 0.0
          %343 = vmatpush.msra.mxu0 %v326
          %344 = vmatmul.f32.gmra.mxu0 %v322
          %v345 = vpop.f32.mrf.mxu0
          %v346 = vadd.f32 %v319, %v345
          %347 = vdwg.mxu0
          %v348 = vxor.u32 %v346, 2147483648
          %v349 = vmul.f32 %v348, 1.442695
          %v350 = vpow.pop %v349
          %v351 = vadd.f32 %v350, 1.0
          %v352 = vrcp.pop %v351
          %v353 = vmul.f32 %v351, %v352
          %v354 = vsub.f32 1.0, %v353
          %v355 = vmul.f32 %v352, %v354
          %v356 = vadd.f32 %v352, %v355
          %vm357 = vweird.f32 %v351
          %vm358 = vweird.f32 %v352
          %vm359 = vmor %vm357, %vm358
          %v360 = vsel %vm359, %v352, %v356
          %v361 = vand.u32 2147483647, %v351
          %vm362 = vcmp.eq.f32.partialorder %v361, 8.507059e+37
          %v363 = vand.u32 %v351, 2147483648
          %v364 = vor.u32 1.1754944e-38, %v363
          %v365 = vsel %vm362, %v364, %v360
          %v366 = vmul.f32 1.0, %v365
          %367 = vst.msk [vmem:[%s259] sm:$0xf] %vm281, %v366
        $region52: #{tpu_custom_call.1} parent=39 // pred_fallthru
          _
        %p368 = scmp.lt.s32.totalorder %s23, 1
        %s369 = scalar_select %p368, %s23, 1
        %s370 = smul.addr %s369, 4
        %s371 = scalar_lea.vmem %s5, %s370
        // Predicated region
        $region53: #{tpu_custom_call.1} parent=39 // pred_check
          %p372 = pneg %p161
        $region54: #{tpu_custom_call.1} parent=39 // pred_check_branch
          %374 = sbr.rel (%p372) target = $region56
        $region55: #{tpu_custom_call.1} parent=39 // pred_region
          _
        $region56: #{tpu_custom_call.1} parent=39 // pred_fallthru
          _
      $region40: #{tpu_custom_call.1} parent=5 // pred_fallthru
        _
      %p375 = scmp.le.s32.totalorder 2, %s14
      // Predicated region
      $region57: #{tpu_custom_call.1} parent=5 // pred_check
        %p376 = pneg %p375
      $region58: #{tpu_custom_call.1} parent=5 // pred_check_branch
        %378 = sbr.rel (%p376) target = $region60
      $region59: #{tpu_custom_call.1} parent=5 // pred_region
        %s379 = ssub.s32 %s14, 2
        // Predicated region
        $region61: #{tpu_custom_call.1} parent=59 // pred_check
          %p380 = pneg %p167
        $region62: #{tpu_custom_call.1} parent=59 // pred_check_branch
          %382 = sbr.rel (%p380) target = $region64
        $region63: #{tpu_custom_call.1} parent=59 // pred_region
          %p383 = scmp.lt.s32.totalorder %s25, 1
          %s384 = scalar_select %p383, %s25, 1
          %s385 = smul.addr %s384, 4
          %s386 = scalar_lea.vmem %s5, %s385
        $region64: #{tpu_custom_call.1} parent=59 // pred_fallthru
          _
      $region60: #{tpu_custom_call.1} parent=5 // pred_fallthru
        _
    $region6: #{tpu_custom_call.1} parent=1 // loop_footer
      %s18 = sadd.s32 1, %s14
    $region7: #{tpu_custom_call.1} parent=1 // loop_footer_branch
      %13 = sbr.rel target = $region3
    $region8: #{tpu_custom_call.1} parent=1 // loop_exit
      _
    %387 = vsyncpa [#allocation4], 1
    %s388 = scalar_lea.sflag [#allocation4], 1
    %389 = vsyncpa %s388, 1

</llo_original>
